<compile_context>
chip_gen: v7x
topology: tpu7x:2x2x1
jax: 0.10.0
libtpu: 0.0.40
codegen_flags: <defaults>
</compile_context>

<pallas_src>
import jax
import jax.numpy as jnp
from jax.experimental import pallas as pl
from jax.experimental.pallas import tpu as pltpu


def scse_kernel(x_ref, c_ref, ws_ref, bs_ref, o_ref):
    # x_ref: (Nb, C, T)   c_ref: (Nb, C, 1)   ws_ref: (C, 1)   bs_ref: (1, 1)
    x = x_ref[...]                                                  # (Nb, C, T)
    c = c_ref[...]                                                  # (Nb, C, 1)

    # sSE branch: 1x1 conv C->1 as broadcast-mul over channels + channel (sublane) sum.
    sp = jnp.sum(x * ws_ref[...], axis=1, keepdims=True) + bs_ref[...]   # (Nb, 1, T)
    sp = jax.nn.sigmoid(sp)

    # Fused combine:  x*cSE(x) + x*sSE(x) == x * (c + sp).
    o_ref[...] = x * (c + sp)


def _round_up(a, b):
    return (a + b - 1) // b * b


_VMEM_BLOCK_BUDGET = 32 * 1024 * 1024  # bytes for double-buffered x + out blocks


def _pick_tiling(n, c, hw):
    """Pick (batch-block Nb, lane tile T, padded HW) so the double-buffered
    input + output blocks (4 * Nb*C*T * 4 bytes) fit the VMEM budget."""
    max_block_elems = _VMEM_BLOCK_BUDGET // (4 * 4)
    hw128 = _round_up(hw, 128)
    t = min(hw128, max(128, (max_block_elems // c) // 128 * 128))
    hw_pad = _round_up(hw, t)
    nb = int(max(1, min(n, max_block_elems // (c * t))))
    while n % nb:                       # Nb must divide N (avoids batch padding)
        nb -= 1
    return nb, t, hw_pad


def scse_forward(x, params):
    """x: (N, C, H, W) float32. params: dict of weights (see init_params)."""
    N, C, H, W = x.shape
    HW = H * W
    w1, b1, w2, b2, ws, bs = (params["w1"], params["b1"], params["w2"],
                              params["b2"], params["ws"], params["bs"])

    x2 = x.reshape(N, C, HW)

    # ---- cSE squeeze path hoisted out of the kernel (only N*C scalars of work) ----
    s = jnp.mean(x2, axis=-1)                                      # (N, C)
    h = jnp.maximum(s @ w1.T + b1[:, 0], 0.0)                      # (N, MID)
    c = jax.nn.sigmoid(h @ w2.T + b2[:, 0])                        # (N, C)
    c3 = c[:, :, None].astype(jnp.float32)                         # (N, C, 1)

    nb, t, hw_pad = _pick_tiling(N, C, HW)
    if hw_pad != HW:
        # Zero-pad spatial dim to a lane-dense multiple of the tile; padded lanes
        # produce out == 0 there and are sliced away below (cSE mean uses true HW).
        x2 = jnp.pad(x2, ((0, 0), (0, 0), (0, hw_pad - HW)))

    ws_col = ws.reshape(C, 1)                                      # (C, 1) for broadcast-mul
    bs11 = bs.reshape(1, 1)

    grid = (N // nb, hw_pad // t)
    block_bytes = 4 * nb * C * t * 4                               # double-buffered in + out
    vmem_limit = int(min(48 * 1024 * 1024,
                         max(16 * 1024 * 1024, block_bytes + (4 << 20))))

    out = pl.pallas_call(
        scse_kernel,
        out_shape=jax.ShapeDtypeStruct((N, C, hw_pad), jnp.float32),
        grid_spec=pltpu.PrefetchScalarGridSpec(
            num_scalar_prefetch=0,
            grid=grid,
            in_specs=[
                pl.BlockSpec((nb, C, t), lambda b, j: (b, 0, j)),   # x tile
                pl.BlockSpec((nb, C, 1), lambda b, j: (b, 0, 0)),   # cSE scale
                pl.BlockSpec((C, 1), lambda b, j: (0, 0)),          # sSE weight
                pl.BlockSpec((1, 1), lambda b, j: (0, 0)),          # sSE bias
            ],
            out_specs=pl.BlockSpec((nb, C, t), lambda b, j: (b, 0, j)),
        ),
        compiler_params=pltpu.CompilerParams(
            dimension_semantics=("parallel", "parallel"),
            vmem_limit_bytes=vmem_limit),
    )(x2, c3, ws_col, bs11)

    return out[:, :, :HW].reshape(N, C, H, W)


def init_params(key, in_channels, reduction=16):
    mid = max(1, in_channels // reduction)
    k1, k2, k3, k4, k5, k6 = jax.random.split(key, 6)
    return {
        "w1": jax.random.normal(k1, (mid, in_channels), jnp.float32) * 0.1,
        "b1": jax.random.normal(k2, (mid, 1), jnp.float32) * 0.1,
        "w2": jax.random.normal(k3, (in_channels, mid), jnp.float32) * 0.1,
        "b2": jax.random.normal(k4, (in_channels, 1), jnp.float32) * 0.1,
        "ws": jax.random.normal(k5, (1, in_channels), jnp.float32) * 0.1,
        "bs": jax.random.normal(k6, (1, 1), jnp.float32) * 0.1,
    }


def scse_reference(x, params):
    """Plain-JAX reference matching the PyTorch forward."""
    s = jnp.mean(x, axis=(2, 3))                                   # (N, C)
    h = jnp.maximum(s @ params["w1"].T + params["b1"][:, 0], 0.0)  # (N, MID)
    c = jax.nn.sigmoid(h @ params["w2"].T + params["b2"][:, 0])    # (N, C)
    cse = x * c[:, :, None, None]
    sp = jnp.einsum("nchw,c->nhw", x, params["ws"][0]) + params["bs"][0, 0]
    sse = x * jax.nn.sigmoid(sp)[:, None, :, :]
    return cse + sse


if __name__ == "__main__":
    # Lane-aligned case: in_channels=32, reduction=16 -> mid=2, H*W=256.
    N, C, H, W = 2, 32, 16, 16
    key = jax.random.PRNGKey(0)
    kx, kp = jax.random.split(key)
    x = jax.random.normal(kx, (N, C, H, W), jnp.float32)
    params = init_params(kp, C, reduction=16)

    out = jax.block_until_ready(scse_forward(x, params))
    ref = scse_reference(x, params)
    assert out.shape == (N, C, H, W)
    assert jnp.allclose(out, ref, atol=1e-5, rtol=1e-5), "mismatch vs reference (aligned)"

    # Non-lane-aligned spatial case (H*W=100 -> padded to 128) exercises the padding path.
    x2 = jax.random.normal(jax.random.PRNGKey(1), (3, 32, 10, 10), jnp.float32)
    p2 = init_params(jax.random.PRNGKey(2), 32, reduction=16)
    out2 = jax.block_until_ready(scse_forward(x2, p2))
    ref2 = scse_reference(x2, p2)
    assert jnp.allclose(out2, ref2, atol=1e-5, rtol=1e-5), "mismatch vs reference (padded)"

    print("KERNEL_OK")
</pallas_src>

<mosaic_0001>
module attributes {stable_mosaic.version = 11 : i64} {
  func.func @scse_kernel(%arg0: i32, %arg1: i32, %arg2: memref<2x32x256xf32, #tpu.memory_space<vmem>>, %arg3: memref<2x32x1xf32, #tpu.memory_space<vmem>>, %arg4: memref<32x1xf32, #tpu.memory_space<vmem>>, %arg5: memref<1x1xf32, #tpu.memory_space<vmem>>, %arg6: memref<2x32x256xf32, #tpu.memory_space<vmem>>) attributes {dimension_semantics = [#tpu.dimension_semantics<parallel>, #tpu.dimension_semantics<parallel>], iteration_bounds = array<i64: 1, 1>, scalar_prefetch = 0 : i64, scratch_operands = 0 : i64, tpu.core_type = #tpu.core_type<tc>, window_params = [{transform_indices = @transform_0, window_bounds = array<i64: 2, 32, 256>}, {transform_indices = @transform_1, window_bounds = array<i64: 2, 32, 1>}, {pipeline_mode = #tpu.pipeline_mode<synchronous>, transform_indices = @transform_2, window_bounds = array<i64: 32, 1>}, {pipeline_mode = #tpu.pipeline_mode<synchronous>, transform_indices = @transform_3, window_bounds = array<i64: 1, 1>}, {transform_indices = @transform_4, window_bounds = array<i64: 2, 32, 256>}]} {
    %c0 = arith.constant 0 : index
    %c0_0 = arith.constant 0 : index
    %c0_1 = arith.constant 0 : index
    %0 = vector.load %arg2[%c0, %c0_0, %c0_1] : memref<2x32x256xf32, #tpu.memory_space<vmem>>, vector<2x32x256xf32>
    %c0_2 = arith.constant 0 : index
    %c0_3 = arith.constant 0 : index
    %c0_4 = arith.constant 0 : index
    %1 = vector.load %arg3[%c0_2, %c0_3, %c0_4] : memref<2x32x1xf32, #tpu.memory_space<vmem>>, vector<2x32x1xf32>
    %c0_5 = arith.constant 0 : index
    %c0_6 = arith.constant 0 : index
    %2 = vector.load %arg4[%c0_5, %c0_6] : memref<32x1xf32, #tpu.memory_space<vmem>>, vector<32x1xf32>
    %3 = vector.shape_cast %2 : vector<32x1xf32> to vector<1x32x1xf32>
    %4 = vector.broadcast %3 : vector<1x32x1xf32> to vector<2x32x256xf32>
    %5 = arith.mulf %0, %4 : vector<2x32x256xf32>
    %cst = arith.constant dense<0.000000e+00> : vector<2x256xf32>
    %6 = vector.multi_reduction <add>, %5, %cst [1] : vector<2x32x256xf32> to vector<2x256xf32>
    %7 = vector.shape_cast %6 : vector<2x256xf32> to vector<2x1x256xf32>
    %c0_7 = arith.constant 0 : index
    %c0_8 = arith.constant 0 : index
    %8 = vector.load %arg5[%c0_7, %c0_8] : memref<1x1xf32, #tpu.memory_space<vmem>>, vector<1x1xf32>
    %9 = vector.shape_cast %8 : vector<1x1xf32> to vector<1x1x1xf32>
    %10 = vector.broadcast %9 : vector<1x1x1xf32> to vector<2x1x256xf32>
    %11 = arith.addf %7, %10 : vector<2x1x256xf32>
    %12 = arith.negf %11 : vector<2x1x256xf32>
    %13 = math.exp %12 : vector<2x1x256xf32>
    %cst_9 = arith.constant 1.000000e+00 : f32
    %14 = vector.broadcast %cst_9 : f32 to vector<2x1x256xf32>
    %15 = arith.addf %14, %13 : vector<2x1x256xf32>
    %16 = arith.divf %14, %15 : vector<2x1x256xf32>
    %17 = vector.broadcast %1 : vector<2x32x1xf32> to vector<2x32x256xf32>
    %18 = vector.broadcast %16 : vector<2x1x256xf32> to vector<2x32x256xf32>
    %19 = arith.addf %17, %18 : vector<2x32x256xf32>
    %20 = arith.mulf %0, %19 : vector<2x32x256xf32>
    %c0_10 = arith.constant 0 : index
    %c0_11 = arith.constant 0 : index
    %c0_12 = arith.constant 0 : index
    %21 = vector.load %arg6[%c0_10, %c0_11, %c0_12] : memref<2x32x256xf32, #tpu.memory_space<vmem>>, vector<2x32x256xf32>
    tpu.vector_store %arg6[%c0_10, %c0_11, %c0_12], %20 {strides = array<i32>} : memref<2x32x256xf32, #tpu.memory_space<vmem>>, vector<2x32x256xf32>,
    return
  }
  func.func @transform_0(%arg0: i32, %arg1: i32) -> (i32, i32, i32) {
    %c0_i32 = arith.constant 0 : i32
    %c0_i32_0 = arith.constant 0 : i32
    return %arg0, %c0_i32, %arg1 : i32, i32, i32
  }
  func.func @transform_1(%arg0: i32, %arg1: i32) -> (i32, i32, i32) {
    %c0_i32 = arith.constant 0 : i32
    %c0_i32_0 = arith.constant 0 : i32
    %c0_i32_1 = arith.constant 0 : i32
    return %arg0, %c0_i32, %c0_i32_0 : i32, i32, i32
  }
  func.func @transform_2(%arg0: i32, %arg1: i32) -> (i32, i32) {
    %c0_i32 = arith.constant 0 : i32
    %c0_i32_0 = arith.constant 0 : i32
    %c0_i32_1 = arith.constant 0 : i32
    return %c0_i32, %c0_i32_0 : i32, i32
  }
  func.func @transform_3(%arg0: i32, %arg1: i32) -> (i32, i32) {
    %c0_i32 = arith.constant 0 : i32
    %c0_i32_0 = arith.constant 0 : i32
    %c0_i32_1 = arith.constant 0 : i32
    return %c0_i32, %c0_i32_0 : i32, i32
  }
  func.func @transform_4(%arg0: i32, %arg1: i32) -> (i32, i32, i32) {
    %c0_i32 = arith.constant 0 : i32
    %c0_i32_0 = arith.constant 0 : i32
    return %arg0, %c0_i32, %arg1 : i32, i32, i32
  }
}

</mosaic_0001>

<llo_original>
// kernel: tpu_custom_call.1
$region0: #{tpu_custom_call.1}
  #allocation0 [shape = 'u32[]', space=smem, size = 0x4, offset = 0x4, fixed_abs, tag = 'smem constant byte address 0x4 - core index']
  #allocation1 [shape = 'u32[144,128]{1,0:T(1,128)}', space=vmem, size = 0x12000, scoped, tag = 'internal scratch']
  #allocation2 [shape = 'f32[1,1]{1,0:T(1,128)S(1)}', space=vmem, size = 0x200, scoped, tag = 'scoped memory for tpu_custom_call.1']
  %s0 = inlined_call_operand.hbm [shape: f32[2,32,256], index: 0, kind: input, shape index: {}]
  %s1 = inlined_call_operand.vmem [shape: f32[2,32,1], index: 1, kind: input, shape index: {}]
  %s2 = inlined_call_operand.vmem [shape: f32[32,1], index: 2, kind: input, shape index: {}]
  %s3 = inlined_call_operand.<no memory space> [shape: f32[1,1], index: 3, kind: input, shape index: {}]
  %s4 = inlined_call_operand.hbm [shape: f32[2,32,256], index: 4, kind: output, shape index: {}]
  %s5 = sld [smem:[#allocation0]]
  $region30: #{tpu_custom_call.1} parent=0
    _
  %s7 = ssub.s32 1, %s5
  %s8 = scalar_select 0, %s7, %s5
  %v9 = vstv %s3
  %10 = vst [vmem:[#allocation2] sm:$0x1] %v9
  $region1: #{tpu_custom_call.1} parent=0
    #allocation3 [shape = 'u8[65536]{0}', space=vmem, size = 0x10000, scoped, tag = 'input window, operand 0, single buffered']
    #allocation4 [shape = 's32[1]{0}', space=sflag, size = 0x4, scoped, tag = 'scoped memory for tpu_custom_call.1']
    #allocation5 [shape = 's32[1]{0}', space=sflag, size = 0x4, scoped, tag = 'scoped memory for tpu_custom_call.1']
    #allocation6 [shape = 'u8[65536]{0}', space=vmem, size = 0x10000, scoped, tag = 'output window, operand 0, single buffered']
    %11 = vsyncpa [#allocation4], 0
    %12 = vsyncpa [#allocation5], 0
    // Predicated region
    $region2: #{tpu_custom_call.1} parent=1 // pred_check
      _
    $region3: #{tpu_custom_call.1} parent=1 // pred_check_branch
      %14 = sbr.rel (0) target = $region5
    $region4: #{tpu_custom_call.1} parent=1 // pred_region
      %s16 = ssub.s32 2048, 2048
      %17 = vsyncadd [#allocation4], %s16
      %s18 = sshll.u32 [#allocation3], 4
      %s19 = int_to_ptr.vmem [resolvable:$true] %s18
      %24 = dma.hbm_to_vmem [thread:$0]  %s0, 2048, %s19, [#allocation4], 256, 256, 16
    $region5: #{tpu_custom_call.1} parent=1 // pred_fallthru
      _
    // Predicated region
    $region6: #{tpu_custom_call.1} parent=1 // pred_check
      _
    $region7: #{tpu_custom_call.1} parent=1 // pred_check_branch
      %26 = sbr.rel (0) target = $region9
    $region8: #{tpu_custom_call.1} parent=1 // pred_region
      _
    $region9: #{tpu_custom_call.1} parent=1 // pred_fallthru
      _
    // Predicated region
    $region10: #{tpu_custom_call.1} parent=1 // pred_check
      _
    $region11: #{tpu_custom_call.1} parent=1 // pred_check_branch
      %28 = sbr.rel (0) target = $region13
    $region12: #{tpu_custom_call.1} parent=1 // pred_region
      _
    $region13: #{tpu_custom_call.1} parent=1 // pred_fallthru
      _
    // Predicated region
    $region14: #{tpu_custom_call.1} parent=1 // pred_check
      _
    $region15: #{tpu_custom_call.1} parent=1 // pred_check_branch
      %30 = sbr.rel (0) target = $region17
    $region16: #{tpu_custom_call.1} parent=1 // pred_region
      _
    $region17: #{tpu_custom_call.1} parent=1 // pred_fallthru
      _
    // Predicated region
    $region18: #{tpu_custom_call.1} parent=1 // pred_check
      _
    $region19: #{tpu_custom_call.1} parent=1 // pred_check_branch
      %32 = sbr.rel (0) target = $region21
    $region20: #{tpu_custom_call.1} parent=1 // pred_region
      %33 = dma.done [#allocation4], 2048
    $region21: #{tpu_custom_call.1} parent=1 // pred_fallthru
      _
    %v34 = vld [vmem:[#allocation3] sm:$0xff]
    %v35 = vld [vmem:[#allocation3 + $0x8] sm:$0xff]
    %v36 = vld [vmem:[#allocation3 + $0x10] sm:$0xff]
    %v37 = vld [vmem:[#allocation3 + $0x18] sm:$0xff]
    %v38 = vld [vmem:[#allocation3 + $0x20] sm:$0xff]
    %v39 = vld [vmem:[#allocation3 + $0x28] sm:$0xff]
    %v40 = vld [vmem:[#allocation3 + $0x30] sm:$0xff]
    %v41 = vld [vmem:[#allocation3 + $0x38] sm:$0xff]
    %v42 = vld [vmem:[#allocation3 + $0x40] sm:$0xff]
    %v43 = vld [vmem:[#allocation3 + $0x48] sm:$0xff]
    %v44 = vld [vmem:[#allocation3 + $0x50] sm:$0xff]
    %v45 = vld [vmem:[#allocation3 + $0x58] sm:$0xff]
    %v46 = vld [vmem:[#allocation3 + $0x60] sm:$0xff]
    %v47 = vld [vmem:[#allocation3 + $0x68] sm:$0xff]
    %v48 = vld [vmem:[#allocation3 + $0x70] sm:$0xff]
    %v49 = vld [vmem:[#allocation3 + $0x78] sm:$0xff]
    %v50 = vld [vmem:[%s1] sm:$0xff]
    %v51 = vld [vmem:[%s1 + $0x8] sm:$0xff]
    %v52 = vld [vmem:[%s1 + $0x10] sm:$0xff]
    %v53 = vld [vmem:[%s1 + $0x18] sm:$0xff]
    %v54 = vld [vmem:[%s1 + $0x20] sm:$0xff]
    %v55 = vld [vmem:[%s1 + $0x28] sm:$0xff]
    %v56 = vld [vmem:[%s1 + $0x30] sm:$0xff]
    %v57 = vld [vmem:[%s1 + $0x38] sm:$0xff]
    %v58 = vld [vmem:[%s2] sm:$0xff]
    %v59 = vld [vmem:[%s2 + $0x8] sm:$0xff]
    %v60 = vld [vmem:[%s2 + $0x10] sm:$0xff]
    %v61 = vld [vmem:[%s2 + $0x18] sm:$0xff]
    %63 = vset.pattern.permute.xlu0 0
    %64 = vperm.xlu0 %63, %v58
    %v65 = vpop.permute.xlu0 %64
    %68 = vset.pattern.permute.xlu0 0
    %69 = vperm.xlu0 %68, %v59
    %v70 = vpop.permute.xlu0 %69
    %73 = vset.pattern.permute.xlu0 0
    %74 = vperm.xlu0 %73, %v60
    %v75 = vpop.permute.xlu0 %74
    %78 = vset.pattern.permute.xlu0 0
    %79 = vperm.xlu0 %78, %v61
    %v80 = vpop.permute.xlu0 %79
    %v82 = vmul.f32 %v34, %v65
    %v83 = vmul.f32 %v35, %v65
    %v84 = vmul.f32 %v36, %v70
    %v85 = vmul.f32 %v37, %v70
    %v86 = vmul.f32 %v38, %v75
    %v87 = vmul.f32 %v39, %v75
    %v88 = vmul.f32 %v40, %v80
    %v89 = vmul.f32 %v41, %v80
    %v90 = vmul.f32 %v42, %v65
    %v91 = vmul.f32 %v43, %v65
    %v92 = vmul.f32 %v44, %v70
    %v93 = vmul.f32 %v45, %v70
    %v94 = vmul.f32 %v46, %v75
    %v95 = vmul.f32 %v47, %v75
    %v96 = vmul.f32 %v48, %v80
    %v97 = vmul.f32 %v49, %v80
    %v98 = vadd.f32 %v82, %v84
    %v99 = vadd.f32 %v98, %v86
    %v100 = vadd.f32 %v99, %v88
    %v101 = vrot.slane %v100, 4
    %v102 = vadd.f32 %v100, %v101
    %v103 = vrot.slane %v102, 2
    %v104 = vadd.f32 %v102, %v103
    %v105 = vrot.slane %v104, 1
    %v106 = vadd.f32 %v104, %v105
    %v107 = vadd.f32 %v83, %v85
    %v108 = vadd.f32 %v107, %v87
    %v109 = vadd.f32 %v108, %v89
    %v110 = vrot.slane %v109, 4
    %v111 = vadd.f32 %v109, %v110
    %v112 = vrot.slane %v111, 2
    %v113 = vadd.f32 %v111, %v112
    %v114 = vrot.slane %v113, 1
    %v115 = vadd.f32 %v113, %v114
    %v116 = vadd.f32 %v90, %v92
    %v117 = vadd.f32 %v116, %v94
    %v118 = vadd.f32 %v117, %v96
    %v119 = vrot.slane %v118, 4
    %v120 = vadd.f32 %v118, %v119
    %v121 = vrot.slane %v120, 2
    %v122 = vadd.f32 %v120, %v121
    %v123 = vrot.slane %v122, 1
    %v124 = vadd.f32 %v122, %v123
    %v125 = vadd.f32 %v91, %v93
    %v126 = vadd.f32 %v125, %v95
    %v127 = vadd.f32 %v126, %v97
    %v128 = vrot.slane %v127, 4
    %v129 = vadd.f32 %v127, %v128
    %v130 = vrot.slane %v129, 2
    %v131 = vadd.f32 %v129, %v130
    %v132 = vrot.slane %v131, 1
    %v133 = vadd.f32 %v131, %v132
    %v134 = vld [vmem:[#allocation2] sm:$0x1]
    %136 = vset.pattern.permute.xlu0 0
    %137 = vperm.xlu0 %136, %v134
    %v138 = vpop.permute.xlu0 %137
    %v140 = vlaneseq
    %v141 = vshrl.u32 %v140, 7
    %v142 = vsub.s32 0, %v141
    %v143 = vrot.slane %v138, %v142
    %v144 = vadd.f32 %v106, %v143
    %v145 = vadd.f32 %v115, %v143
    %v146 = vadd.f32 %v124, %v143
    %v147 = vadd.f32 %v133, %v143
    %v148 = vxor.u32 %v144, 2147483648
    %v149 = vxor.u32 %v145, 2147483648
    %v150 = vxor.u32 %v146, 2147483648
    %v151 = vxor.u32 %v147, 2147483648
    %v152 = vmul.f32 %v148, 1.442695
    %v153 = vpow.pop %v152
    %v154 = vmul.f32 %v149, 1.442695
    %v155 = vpow.pop %v154
    %v156 = vmul.f32 %v150, 1.442695
    %v157 = vpow.pop %v156
    %v158 = vmul.f32 %v151, 1.442695
    %v159 = vpow.pop %v158
    %v160 = vadd.f32 %v153, 1.0
    %v161 = vadd.f32 %v155, 1.0
    %v162 = vadd.f32 %v157, 1.0
    %v163 = vadd.f32 %v159, 1.0
    %v164 = vrcp.pop %v160
    %v165 = vmul.f32 1.0, %v164
    %v166 = vrcp.pop %v161
    %v167 = vmul.f32 1.0, %v166
    %v168 = vrcp.pop %v162
    %v169 = vmul.f32 1.0, %v168
    %v170 = vrcp.pop %v163
    %v171 = vmul.f32 1.0, %v170
    %173 = vset.pattern.permute.xlu0 0
    %174 = vperm.xlu0 %173, %v50
    %v175 = vpop.permute.xlu0 %174
    %178 = vset.pattern.permute.xlu0 0
    %179 = vperm.xlu0 %178, %v51
    %v180 = vpop.permute.xlu0 %179
    %183 = vset.pattern.permute.xlu0 0
    %184 = vperm.xlu0 %183, %v52
    %v185 = vpop.permute.xlu0 %184
    %188 = vset.pattern.permute.xlu0 0
    %189 = vperm.xlu0 %188, %v53
    %v190 = vpop.permute.xlu0 %189
    %193 = vset.pattern.permute.xlu0 0
    %194 = vperm.xlu0 %193, %v54
    %v195 = vpop.permute.xlu0 %194
    %198 = vset.pattern.permute.xlu0 0
    %199 = vperm.xlu0 %198, %v55
    %v200 = vpop.permute.xlu0 %199
    %203 = vset.pattern.permute.xlu0 0
    %204 = vperm.xlu0 %203, %v56
    %v205 = vpop.permute.xlu0 %204
    %208 = vset.pattern.permute.xlu0 0
    %209 = vperm.xlu0 %208, %v57
    %v210 = vpop.permute.xlu0 %209
    %v212 = vadd.f32 %v175, %v165
    %v213 = vadd.f32 %v175, %v167
    %v214 = vadd.f32 %v180, %v165
    %v215 = vadd.f32 %v180, %v167
    %v216 = vadd.f32 %v185, %v165
    %v217 = vadd.f32 %v185, %v167
    %v218 = vadd.f32 %v190, %v165
    %v219 = vadd.f32 %v190, %v167
    %v220 = vadd.f32 %v195, %v169
    %v221 = vadd.f32 %v195, %v171
    %v222 = vadd.f32 %v200, %v169
    %v223 = vadd.f32 %v200, %v171
    %v224 = vadd.f32 %v205, %v169
    %v225 = vadd.f32 %v205, %v171
    %v226 = vadd.f32 %v210, %v169
    %v227 = vadd.f32 %v210, %v171
    %v228 = vmul.f32 %v34, %v212
    %v229 = vmul.f32 %v35, %v213
    %v230 = vmul.f32 %v36, %v214
    %v231 = vmul.f32 %v37, %v215
    %v232 = vmul.f32 %v38, %v216
    %v233 = vmul.f32 %v39, %v217
    %v234 = vmul.f32 %v40, %v218
    %v235 = vmul.f32 %v41, %v219
    %v236 = vmul.f32 %v42, %v220
    %v237 = vmul.f32 %v43, %v221
    %v238 = vmul.f32 %v44, %v222
    %v239 = vmul.f32 %v45, %v223
    %v240 = vmul.f32 %v46, %v224
    %v241 = vmul.f32 %v47, %v225
    %v242 = vmul.f32 %v48, %v226
    %v243 = vmul.f32 %v49, %v227
    %244 = vst [vmem:[#allocation6] sm:$0xff] %v228
    %245 = vst [vmem:[#allocation6 + $0x8] sm:$0xff] %v229
    %246 = vst [vmem:[#allocation6 + $0x10] sm:$0xff] %v230
    %247 = vst [vmem:[#allocation6 + $0x18] sm:$0xff] %v231
    %248 = vst [vmem:[#allocation6 + $0x20] sm:$0xff] %v232
    %249 = vst [vmem:[#allocation6 + $0x28] sm:$0xff] %v233
    %250 = vst [vmem:[#allocation6 + $0x30] sm:$0xff] %v234
    %251 = vst [vmem:[#allocation6 + $0x38] sm:$0xff] %v235
    %252 = vst [vmem:[#allocation6 + $0x40] sm:$0xff] %v236
    %253 = vst [vmem:[#allocation6 + $0x48] sm:$0xff] %v237
    %254 = vst [vmem:[#allocation6 + $0x50] sm:$0xff] %v238
    %255 = vst [vmem:[#allocation6 + $0x58] sm:$0xff] %v239
    %256 = vst [vmem:[#allocation6 + $0x60] sm:$0xff] %v240
    %257 = vst [vmem:[#allocation6 + $0x68] sm:$0xff] %v241
    %258 = vst [vmem:[#allocation6 + $0x70] sm:$0xff] %v242
    %259 = vst [vmem:[#allocation6 + $0x78] sm:$0xff] %v243
    // Predicated region
    $region22: #{tpu_custom_call.1} parent=1 // pred_check
      _
    $region23: #{tpu_custom_call.1} parent=1 // pred_check_branch
      %261 = sbr.rel (0) target = $region25
    $region24: #{tpu_custom_call.1} parent=1 // pred_region
      %s263 = ssub.s32 2048, 2048
      %264 = vsyncadd [#allocation5], %s263
      %s265 = sshll.u32 [#allocation6], 4
      %s266 = int_to_ptr.vmem [resolvable:$true] %s265
      %271 = dma.vmem_to_hbm [thread:$0]  %s266, 2048, %s4, [#allocation5], 256, 256, 16
    $region25: #{tpu_custom_call.1} parent=1 // pred_fallthru
      _
    // Predicated region
    $region26: #{tpu_custom_call.1} parent=1 // pred_check
      _
    $region27: #{tpu_custom_call.1} parent=1 // pred_check_branch
      %273 = sbr.rel (0) target = $region29
    $region28: #{tpu_custom_call.1} parent=1 // pred_region
      %274 = dma.done [#allocation5], 2048
    $region29: #{tpu_custom_call.1} parent=1 // pred_fallthru
      _
    %275 = vsyncpa [#allocation4], 1
    %276 = vsyncpa [#allocation5], 1

</llo_original>
